<compile_context>
chip_gen: v6e
topology: v6e:2x2x1
jax: 0.10.0
libtpu: 0.0.40
codegen_flags: <defaults>
</compile_context>

<pallas_src>
import jax
import jax.numpy as jnp
from jax.experimental import pallas as pl
from jax.experimental.pallas import tpu as pltpu

VOCAB_SIZE = 256      # synthetic vocab (stands in for len(elements_list)); multiple of 128
EMBED_DIM = 32
HIDDEN = 128
CONTEXT = 8           # number of context word indices per example
BATCH = 16            # number of examples per call


def make_cbow_kernel(tb, ctx, vocab):
    def cbow_kernel(idx_ref, we1_ref, b1_ref, w2_ref, b2_ref, out_ref):
        # idx_ref: (tb, C) int32 VMEM word indices
        # we1_ref: (V, H) pre-folded emb @ W1 (mxu dtype)
        # w2_ref : (H, V) (mxu dtype); b1_ref/b2_ref: (1, H)/(1, V) f32
        idx = idx_ref[...]                                              # (tb, C)
        col = jax.lax.broadcasted_iota(jnp.int32, (tb, vocab), 1)       # (tb, V)

        # counts[b, v] = # of times vocab id v appears in example b's context.
        # Vectorized one-hot/counts build on the VPU (replaces the old 64-iteration
        # scalar gather loop).  Static unroll over C=8; all full-vreg compares/adds.
        counts = jnp.zeros((tb, vocab), jnp.float32)
        for c in range(ctx):
            counts = counts + (col == idx[:, c:c + 1]).astype(jnp.float32)

        # linear1 with embedding gather + context-sum folded in (linearity):
        #   (sum_c emb[id_c]) @ W1 + b1 == counts @ (emb @ W1) + b1
        h = jnp.dot(counts.astype(we1_ref.dtype), we1_ref[...],
                    preferred_element_type=jnp.float32)                  # (tb, H)
        h = jnp.maximum(h + b1_ref[...], 0.0)                            # bias + ReLU (f32)

        # linear2: (tb, H) @ (H, V) + (1, V)
        logits = jnp.dot(h.astype(w2_ref.dtype), w2_ref[...],
                         preferred_element_type=jnp.float32) + b2_ref[...]

        # LogSoftmax(dim=-1), numerically stable, kept in f32.
        m = jnp.max(logits, axis=-1, keepdims=True)
        shifted = logits - m
        lse = jnp.log(jnp.sum(jnp.exp(shifted), axis=-1, keepdims=True))
        out_ref[...] = shifted - lse

    return cbow_kernel


def cbow_forward(inputs, embedding_table, w1, b1, w2, b2, *,
                 tile_b=None, mxu_dtype=jnp.float32):
    """inputs: (B, C) int32 word indices. Returns (B, V) log-probabilities."""
    B, C = inputs.shape
    V, D = embedding_table.shape
    H = w1.shape[1]
    if tile_b is None:
        tile_b = B                      # whole batch in a single grid step
    assert B % tile_b == 0, "batch must be a multiple of the batch tile"
    assert V % 128 == 0, "keep V lane-dense"

    # Pre-fold the embedding table through linear1 once in the wrapper (weights are
    # reused across calls).  Full precision so the f32 path matches the reference.
    we1 = jnp.dot(embedding_table, w1,
                  precision=jax.lax.Precision.HIGHEST).astype(mxu_dtype)   # (V, H)
    w2c = w2.astype(mxu_dtype)                                             # (H, V)
    b1r = b1.reshape(1, H).astype(jnp.float32)
    b2r = b2.reshape(1, V).astype(jnp.float32)
    idx = inputs.astype(jnp.int32)

    kernel = make_cbow_kernel(tile_b, C, V)

    grid_spec = pl.GridSpec(
        grid=(B // tile_b,),
        in_specs=[
            pl.BlockSpec((tile_b, C), lambda b: (b, 0)),   # word indices (VMEM int32)
            # Constant block index => weights stay VMEM-resident across grid steps.
            pl.BlockSpec((V, H), lambda b: (0, 0)),        # folded emb @ W1
            pl.BlockSpec((1, H), lambda b: (0, 0)),        # b1
            pl.BlockSpec((H, V), lambda b: (0, 0)),        # w2
            pl.BlockSpec((1, V), lambda b: (0, 0)),        # b2
        ],
        out_specs=pl.BlockSpec((tile_b, V), lambda b: (b, 0)),
    )

    return pl.pallas_call(
        kernel,
        out_shape=jax.ShapeDtypeStruct((B, V), jnp.float32),
        grid_spec=grid_spec,
        # One step for the shipped B=16; a ~1-2 us kernel isn't worth a 2-TC split,
        # so the (trivial) batch axis is marked "arbitrary".
        compiler_params=pltpu.CompilerParams(
            dimension_semantics=("arbitrary",)),
    )(idx, we1, b1r, w2c, b2r)


def reference_forward(inputs, embedding_table, w1, b1, w2, b2):
    """Pure-JAX reference: the original per-example forward, vmapped over batch."""
    def single(idx):
        embeds = jnp.sum(embedding_table[idx], axis=0).reshape(1, -1)
        h = jnp.maximum(
            jnp.dot(embeds, w1, precision=jax.lax.Precision.HIGHEST) + b1, 0.0)
        logits = jnp.dot(h, w2, precision=jax.lax.Precision.HIGHEST) + b2
        return jax.nn.log_softmax(logits, axis=-1)[0]
    return jax.vmap(single)(inputs)


if __name__ == "__main__":
    key = jax.random.PRNGKey(0)
    k_emb, k_w1, k_b1, k_w2, k_b2, k_idx = jax.random.split(key, 6)

    # Deterministic synthetic parameters (shapes from the module __init__).
    embedding_table = jax.random.normal(k_emb, (VOCAB_SIZE, EMBED_DIM), jnp.float32)
    # nn.Linear stores weight as (out, in); we pass it pre-transposed as (in, out).
    w1 = jax.random.normal(k_w1, (EMBED_DIM, HIDDEN), jnp.float32) * 0.1
    b1 = jax.random.normal(k_b1, (1, HIDDEN), jnp.float32) * 0.1
    w2 = jax.random.normal(k_w2, (HIDDEN, VOCAB_SIZE), jnp.float32) * 0.1
    b2 = jax.random.normal(k_b2, (1, VOCAB_SIZE), jnp.float32) * 0.1

    # Batched context word indices (LongTensor in torch -> int32 here).
    inputs = jax.random.randint(k_idx, (BATCH, CONTEXT), 0, VOCAB_SIZE, jnp.int32)

    ref = reference_forward(inputs, embedding_table, w1, b1, w2, b2)

    # Exact path: f32 MXU operands (matches f32 reference tightly).
    out = cbow_forward(inputs, embedding_table, w1, b1, w2, b2,
                       mxu_dtype=jnp.float32)
    out = jax.block_until_ready(out)
    assert out.shape == (BATCH, VOCAB_SIZE)
    assert jnp.allclose(out, ref, atol=1e-4, rtol=1e-4), \
        float(jnp.max(jnp.abs(out - ref)))

    # v6e/v7x-native path: bf16 MXU operands, f32 accumulation / bias / softmax.
    # Checked at a looser tolerance (bf16 weight rounding ~1e-2 on the log-probs).
    out_bf16 = cbow_forward(inputs, embedding_table, w1, b1, w2, b2,
                            mxu_dtype=jnp.bfloat16)
    out_bf16 = jax.block_until_ready(out_bf16)
    assert jnp.allclose(out_bf16, ref, atol=5e-2, rtol=5e-2), \
        float(jnp.max(jnp.abs(out_bf16 - ref)))

    print("KERNEL_OK")
</pallas_src>

<mosaic_0001>
module attributes {stable_mosaic.version = 11 : i64} {
  func.func @cbow_kernel(%arg0: i32, %arg1: memref<16x8xi32, #tpu.memory_space<vmem>>, %arg2: memref<256x128xf32, #tpu.memory_space<vmem>>, %arg3: memref<1x128xf32, #tpu.memory_space<vmem>>, %arg4: memref<128x256xf32, #tpu.memory_space<vmem>>, %arg5: memref<1x256xf32, #tpu.memory_space<vmem>>, %arg6: memref<16x256xf32, #tpu.memory_space<vmem>>) attributes {dimension_semantics = [#tpu.dimension_semantics<arbitrary>], iteration_bounds = array<i64: 1>, scalar_prefetch = 0 : i64, scratch_operands = 0 : i64, tpu.core_type = #tpu.core_type<tc>, window_params = [{transform_indices = @transform_0, window_bounds = array<i64: 16, 8>}, {pipeline_mode = #tpu.pipeline_mode<synchronous>, transform_indices = @transform_1, window_bounds = array<i64: 256, 128>}, {pipeline_mode = #tpu.pipeline_mode<synchronous>, transform_indices = @transform_2, window_bounds = array<i64: 1, 128>}, {pipeline_mode = #tpu.pipeline_mode<synchronous>, transform_indices = @transform_3, window_bounds = array<i64: 128, 256>}, {pipeline_mode = #tpu.pipeline_mode<synchronous>, transform_indices = @transform_4, window_bounds = array<i64: 1, 256>}, {transform_indices = @transform_5, window_bounds = array<i64: 16, 256>}]} {
    %c0 = arith.constant 0 : index
    %c0_0 = arith.constant 0 : index
    %0 = vector.load %arg1[%c0, %c0_0] : memref<16x8xi32, #tpu.memory_space<vmem>>, vector<16x8xi32>
    %1 = tpu.iota {dimensions = array<i32: 1>} : vector<16x256xi32>
    %cst = arith.constant 0.000000e+00 : f32
    %2 = vector.broadcast %cst : f32 to vector<16x256xf32>
    %3 = vector.extract_strided_slice %0 {offsets = [0, 0], sizes = [16, 1], strides = [1, 1]} : vector<16x8xi32> to vector<16x1xi32>
    %4 = vector.broadcast %3 : vector<16x1xi32> to vector<16x256xi32>
    %5 = arith.cmpi eq, %1, %4 : vector<16x256xi32>
    %6 = arith.extui %5 : vector<16x256xi1> to vector<16x256xi32>
    %7 = arith.sitofp %6 : vector<16x256xi32> to vector<16x256xf32>
    %8 = arith.addf %2, %7 : vector<16x256xf32>
    %9 = vector.extract_strided_slice %0 {offsets = [0, 1], sizes = [16, 1], strides = [1, 1]} : vector<16x8xi32> to vector<16x1xi32>
    %10 = vector.broadcast %9 : vector<16x1xi32> to vector<16x256xi32>
    %11 = arith.cmpi eq, %1, %10 : vector<16x256xi32>
    %12 = arith.extui %11 : vector<16x256xi1> to vector<16x256xi32>
    %13 = arith.sitofp %12 : vector<16x256xi32> to vector<16x256xf32>
    %14 = arith.addf %8, %13 : vector<16x256xf32>
    %15 = vector.extract_strided_slice %0 {offsets = [0, 2], sizes = [16, 1], strides = [1, 1]} : vector<16x8xi32> to vector<16x1xi32>
    %16 = vector.broadcast %15 : vector<16x1xi32> to vector<16x256xi32>
    %17 = arith.cmpi eq, %1, %16 : vector<16x256xi32>
    %18 = arith.extui %17 : vector<16x256xi1> to vector<16x256xi32>
    %19 = arith.sitofp %18 : vector<16x256xi32> to vector<16x256xf32>
    %20 = arith.addf %14, %19 : vector<16x256xf32>
    %21 = vector.extract_strided_slice %0 {offsets = [0, 3], sizes = [16, 1], strides = [1, 1]} : vector<16x8xi32> to vector<16x1xi32>
    %22 = vector.broadcast %21 : vector<16x1xi32> to vector<16x256xi32>
    %23 = arith.cmpi eq, %1, %22 : vector<16x256xi32>
    %24 = arith.extui %23 : vector<16x256xi1> to vector<16x256xi32>
    %25 = arith.sitofp %24 : vector<16x256xi32> to vector<16x256xf32>
    %26 = arith.addf %20, %25 : vector<16x256xf32>
    %27 = vector.extract_strided_slice %0 {offsets = [0, 4], sizes = [16, 1], strides = [1, 1]} : vector<16x8xi32> to vector<16x1xi32>
    %28 = vector.broadcast %27 : vector<16x1xi32> to vector<16x256xi32>
    %29 = arith.cmpi eq, %1, %28 : vector<16x256xi32>
    %30 = arith.extui %29 : vector<16x256xi1> to vector<16x256xi32>
    %31 = arith.sitofp %30 : vector<16x256xi32> to vector<16x256xf32>
    %32 = arith.addf %26, %31 : vector<16x256xf32>
    %33 = vector.extract_strided_slice %0 {offsets = [0, 5], sizes = [16, 1], strides = [1, 1]} : vector<16x8xi32> to vector<16x1xi32>
    %34 = vector.broadcast %33 : vector<16x1xi32> to vector<16x256xi32>
    %35 = arith.cmpi eq, %1, %34 : vector<16x256xi32>
    %36 = arith.extui %35 : vector<16x256xi1> to vector<16x256xi32>
    %37 = arith.sitofp %36 : vector<16x256xi32> to vector<16x256xf32>
    %38 = arith.addf %32, %37 : vector<16x256xf32>
    %39 = vector.extract_strided_slice %0 {offsets = [0, 6], sizes = [16, 1], strides = [1, 1]} : vector<16x8xi32> to vector<16x1xi32>
    %40 = vector.broadcast %39 : vector<16x1xi32> to vector<16x256xi32>
    %41 = arith.cmpi eq, %1, %40 : vector<16x256xi32>
    %42 = arith.extui %41 : vector<16x256xi1> to vector<16x256xi32>
    %43 = arith.sitofp %42 : vector<16x256xi32> to vector<16x256xf32>
    %44 = arith.addf %38, %43 : vector<16x256xf32>
    %45 = vector.extract_strided_slice %0 {offsets = [0, 7], sizes = [16, 1], strides = [1, 1]} : vector<16x8xi32> to vector<16x1xi32>
    %46 = vector.broadcast %45 : vector<16x1xi32> to vector<16x256xi32>
    %47 = arith.cmpi eq, %1, %46 : vector<16x256xi32>
    %48 = arith.extui %47 : vector<16x256xi1> to vector<16x256xi32>
    %49 = arith.sitofp %48 : vector<16x256xi32> to vector<16x256xf32>
    %50 = arith.addf %44, %49 : vector<16x256xf32>
    %c0_1 = arith.constant 0 : index
    %c0_2 = arith.constant 0 : index
    %51 = vector.load %arg2[%c0_1, %c0_2] : memref<256x128xf32, #tpu.memory_space<vmem>>, vector<256x128xf32>
    %cst_3 = arith.constant dense<0.000000e+00> : vector<16x128xf32>
    %52 = tpu.matmul %50, %51, %cst_3 {dimension_numbers = #tpu.dot_dimension_numbers<[1], [0], [0], [1], [0, 0, 1, 1], [], []>} : vector<16x256xf32>, vector<256x128xf32>, vector<16x128xf32> -> vector<16x128xf32>
    %c0_4 = arith.constant 0 : index
    %c0_5 = arith.constant 0 : index
    %53 = vector.load %arg3[%c0_4, %c0_5] : memref<1x128xf32, #tpu.memory_space<vmem>>, vector<1x128xf32>
    %54 = vector.broadcast %53 : vector<1x128xf32> to vector<16x128xf32>
    %55 = arith.addf %52, %54 : vector<16x128xf32>
    %cst_6 = arith.constant 0.000000e+00 : f32
    %56 = vector.broadcast %cst_6 : f32 to vector<16x128xf32>
    %57 = arith.maximumf %55, %56 : vector<16x128xf32>
    %c0_7 = arith.constant 0 : index
    %c0_8 = arith.constant 0 : index
    %58 = vector.load %arg4[%c0_7, %c0_8] : memref<128x256xf32, #tpu.memory_space<vmem>>, vector<128x256xf32>
    %cst_9 = arith.constant dense<0.000000e+00> : vector<16x256xf32>
    %59 = tpu.matmul %57, %58, %cst_9 {dimension_numbers = #tpu.dot_dimension_numbers<[1], [0], [0], [1], [0, 0, 1, 1], [], []>} : vector<16x128xf32>, vector<128x256xf32>, vector<16x256xf32> -> vector<16x256xf32>
    %c0_10 = arith.constant 0 : index
    %c0_11 = arith.constant 0 : index
    %60 = vector.load %arg5[%c0_10, %c0_11] : memref<1x256xf32, #tpu.memory_space<vmem>>, vector<1x256xf32>
    %61 = vector.broadcast %60 : vector<1x256xf32> to vector<16x256xf32>
    %62 = arith.addf %59, %61 : vector<16x256xf32>
    %cst_12 = arith.constant dense<0xFF800000> : vector<16xf32>
    %63 = vector.multi_reduction <maximumf>, %62, %cst_12 [1] : vector<16x256xf32> to vector<16xf32>
    %64 = vector.shape_cast %63 : vector<16xf32> to vector<16x1xf32>
    %65 = vector.broadcast %64 : vector<16x1xf32> to vector<16x256xf32>
    %66 = arith.subf %62, %65 : vector<16x256xf32>
    %67 = math.exp %66 : vector<16x256xf32>
    %cst_13 = arith.constant dense<0.000000e+00> : vector<16xf32>
    %68 = vector.multi_reduction <add>, %67, %cst_13 [1] : vector<16x256xf32> to vector<16xf32>
    %69 = vector.shape_cast %68 : vector<16xf32> to vector<16x1xf32>
    %70 = math.log %69 : vector<16x1xf32>
    %71 = vector.broadcast %70 : vector<16x1xf32> to vector<16x256xf32>
    %72 = arith.subf %66, %71 : vector<16x256xf32>
    %c0_14 = arith.constant 0 : index
    %c0_15 = arith.constant 0 : index
    %73 = vector.load %arg6[%c0_14, %c0_15] : memref<16x256xf32, #tpu.memory_space<vmem>>, vector<16x256xf32>
    tpu.vector_store %arg6[%c0_14, %c0_15], %72 {strides = array<i32>} : memref<16x256xf32, #tpu.memory_space<vmem>>, vector<16x256xf32>,
    return
  }
  func.func @transform_0(%arg0: i32) -> (i32, i32) {
    %c0_i32 = arith.constant 0 : i32
    %c0_i32_0 = arith.constant 0 : i32
    return %arg0, %c0_i32 : i32, i32
  }
  func.func @transform_1(%arg0: i32) -> (i32, i32) {
    %c0_i32 = arith.constant 0 : i32
    %c0_i32_0 = arith.constant 0 : i32
    %c0_i32_1 = arith.constant 0 : i32
    return %c0_i32, %c0_i32_0 : i32, i32
  }
  func.func @transform_2(%arg0: i32) -> (i32, i32) {
    %c0_i32 = arith.constant 0 : i32
    %c0_i32_0 = arith.constant 0 : i32
    %c0_i32_1 = arith.constant 0 : i32
    return %c0_i32, %c0_i32_0 : i32, i32
  }
  func.func @transform_3(%arg0: i32) -> (i32, i32) {
    %c0_i32 = arith.constant 0 : i32
    %c0_i32_0 = arith.constant 0 : i32
    %c0_i32_1 = arith.constant 0 : i32
    return %c0_i32, %c0_i32_0 : i32, i32
  }
  func.func @transform_4(%arg0: i32) -> (i32, i32) {
    %c0_i32 = arith.constant 0 : i32
    %c0_i32_0 = arith.constant 0 : i32
    %c0_i32_1 = arith.constant 0 : i32
    return %c0_i32, %c0_i32_0 : i32, i32
  }
  func.func @transform_5(%arg0: i32) -> (i32, i32) {
    %c0_i32 = arith.constant 0 : i32
    %c0_i32_0 = arith.constant 0 : i32
    return %arg0, %c0_i32 : i32, i32
  }
}

</mosaic_0001>

<llo_original>
// kernel: tpu_custom_call.1
$region0: #{tpu_custom_call.1}
  #allocation0 [shape = 'u32[]', space=smem, size = 0x4, offset = 0x4, fixed_abs, tag = 'smem constant byte address 0x4 - core index']
  #allocation1 [shape = 'u32[144,128]{1,0:T(1,128)}', space=vmem, size = 0x12000, scoped, tag = 'internal scratch']
  %s0 = inlined_call_operand.vmem [shape: s32[16,8], index: 0, kind: input, shape index: {}]
  %s1 = inlined_call_operand.hbm [shape: f32[256,128], index: 1, kind: input, shape index: {}]
  %s2 = inlined_call_operand.vmem [shape: f32[1,128], index: 2, kind: input, shape index: {}]
  %s3 = inlined_call_operand.hbm [shape: f32[128,256], index: 3, kind: input, shape index: {}]
  %s4 = inlined_call_operand.vmem [shape: f32[1,256], index: 4, kind: input, shape index: {}]
  %s5 = inlined_call_operand.hbm [shape: f32[16,256], index: 5, kind: output, shape index: {}]
  %s6 = sld [smem:[#allocation0]]
  $region38: #{tpu_custom_call.1} parent=0
    _
  %s8 = ssub.s32 1, %s6
  %s9 = scalar_select 0, %s8, %s6
  $region1: #{tpu_custom_call.1} parent=0
    #allocation2 [shape = 'u8[131072]{0}', space=vmem, size = 0x20000, scoped, tag = 'input window, operand 1, single buffered']
    #allocation3 [shape = 's32[1]{0}', space=sflag, size = 0x4, scoped, tag = 'scoped memory for tpu_custom_call.1']
    #allocation4 [shape = 's32[1]{0}', space=sflag, size = 0x4, scoped, tag = 'scoped memory for tpu_custom_call.1']
    #allocation5 [shape = 'u8[131072]{0}', space=vmem, size = 0x20000, scoped, tag = 'input window, operand 3, single buffered']
    #allocation6 [shape = 's32[1]{0}', space=sflag, size = 0x4, scoped, tag = 'scoped memory for tpu_custom_call.1']
    #allocation7 [shape = 'u8[16384]{0}', space=vmem, size = 0x4000, scoped, tag = 'output window, operand 0, single buffered']
    %10 = vsyncpa [#allocation3], 0
    %11 = vsyncpa [#allocation6], 0
    %12 = vsyncpa [#allocation4], 0
    // Predicated region
    $region2: #{tpu_custom_call.1} parent=1 // pred_check
      _
    $region3: #{tpu_custom_call.1} parent=1 // pred_check_branch
      %14 = sbr.rel (0) target = $region5
    $region4: #{tpu_custom_call.1} parent=1 // pred_region
      _
    $region5: #{tpu_custom_call.1} parent=1 // pred_fallthru
      _
    // Predicated region
    $region6: #{tpu_custom_call.1} parent=1 // pred_check
      _
    $region7: #{tpu_custom_call.1} parent=1 // pred_check_branch
      %16 = sbr.rel (0) target = $region9
    $region8: #{tpu_custom_call.1} parent=1 // pred_region
      %s18 = ssub.s32 4096, 4096
      %19 = vsyncadd [#allocation3], %s18
      %s20 = sshll.u32 [#allocation2], 4
      %s21 = int_to_ptr.vmem [resolvable:$true] %s20
      %26 = dma.hbm_to_vmem [thread:$0]  %s1, 4096, %s21, [#allocation3], 128, 128, 8
    $region9: #{tpu_custom_call.1} parent=1 // pred_fallthru
      _
    // Predicated region
    $region10: #{tpu_custom_call.1} parent=1 // pred_check
      _
    $region11: #{tpu_custom_call.1} parent=1 // pred_check_branch
      %28 = sbr.rel (0) target = $region13
    $region12: #{tpu_custom_call.1} parent=1 // pred_region
      _
    $region13: #{tpu_custom_call.1} parent=1 // pred_fallthru
      _
    // Predicated region
    $region14: #{tpu_custom_call.1} parent=1 // pred_check
      _
    $region15: #{tpu_custom_call.1} parent=1 // pred_check_branch
      %30 = sbr.rel (0) target = $region17
    $region16: #{tpu_custom_call.1} parent=1 // pred_region
      %s32 = ssub.s32 4096, 4096
      %33 = vsyncadd [#allocation6], %s32
      %s34 = sshll.u32 [#allocation5], 4
      %s35 = int_to_ptr.vmem [resolvable:$true] %s34
      %40 = dma.hbm_to_vmem [thread:$0]  %s3, 4096, %s35, [#allocation6], 256, 256, 16
    $region17: #{tpu_custom_call.1} parent=1 // pred_fallthru
      _
    // Predicated region
    $region18: #{tpu_custom_call.1} parent=1 // pred_check
      _
    $region19: #{tpu_custom_call.1} parent=1 // pred_check_branch
      %42 = sbr.rel (0) target = $region21
    $region20: #{tpu_custom_call.1} parent=1 // pred_region
      _
    $region21: #{tpu_custom_call.1} parent=1 // pred_fallthru
      _
    // Predicated region
    $region22: #{tpu_custom_call.1} parent=1 // pred_check
      _
    $region23: #{tpu_custom_call.1} parent=1 // pred_check_branch
      %44 = sbr.rel (0) target = $region25
    $region24: #{tpu_custom_call.1} parent=1 // pred_region
      %45 = dma.done [#allocation3], 4096
    $region25: #{tpu_custom_call.1} parent=1 // pred_fallthru
      _
    // Predicated region
    $region26: #{tpu_custom_call.1} parent=1 // pred_check
      _
    $region27: #{tpu_custom_call.1} parent=1 // pred_check_branch
      %47 = sbr.rel (0) target = $region29
    $region28: #{tpu_custom_call.1} parent=1 // pred_region
      %48 = dma.done [#allocation6], 4096
    $region29: #{tpu_custom_call.1} parent=1 // pred_fallthru
      _
    %v49 = vld [vmem:[%s0] sm:$0xff]
    %v50 = vld [vmem:[%s0 + $0x8] sm:$0xff]
    %v51 = vlaneseq
    %v52 = vand.u32 %v51, 127
    %v53 = vadd.s32 %v52, 128
    %54 = vset.pattern.permute.xlu0 0
    %55 = vperm.xlu0 %54, %v49
    %v56 = vpop.permute.xlu0 %55
    %57 = vset.pattern.permute.xlu0 0
    %58 = vperm.xlu0 %57, %v50
    %v59 = vpop.permute.xlu0 %58
    %vm60 = vcmp.eq.s32.totalorder %v52, %v56
    %vm61 = vcmp.eq.s32.totalorder %v53, %v56
    %vm62 = vcmp.eq.s32.totalorder %v52, %v59
    %vm63 = vcmp.eq.s32.totalorder %v53, %v59
    %v64 = vsel %vm60, 1, 0
    %v65 = vsel %vm61, 1, 0
    %v66 = vsel %vm62, 1, 0
    %v67 = vsel %vm63, 1, 0
    %v68 = vcvt.s32.f32 %v64
    %v69 = vcvt.s32.f32 %v65
    %v70 = vcvt.s32.f32 %v66
    %v71 = vcvt.s32.f32 %v67
    %v72 = vadd.f32 %v68, 0.0
    %v73 = vadd.f32 %v69, 0.0
    %v74 = vadd.f32 %v70, 0.0
    %v75 = vadd.f32 %v71, 0.0
    %76 = vset.pattern.permute.xlu0 1
    %77 = vperm.xlu0 %76, %v49
    %v78 = vpop.permute.xlu0 %77
    %79 = vset.pattern.permute.xlu0 1
    %80 = vperm.xlu0 %79, %v50
    %v81 = vpop.permute.xlu0 %80
    %vm82 = vcmp.eq.s32.totalorder %v52, %v78
    %vm83 = vcmp.eq.s32.totalorder %v53, %v78
    %vm84 = vcmp.eq.s32.totalorder %v52, %v81
    %vm85 = vcmp.eq.s32.totalorder %v53, %v81
    %v86 = vsel %vm82, 1, 0
    %v87 = vsel %vm83, 1, 0
    %v88 = vsel %vm84, 1, 0
    %v89 = vsel %vm85, 1, 0
    %v90 = vcvt.s32.f32 %v86
    %v91 = vcvt.s32.f32 %v87
    %v92 = vcvt.s32.f32 %v88
    %v93 = vcvt.s32.f32 %v89
    %v94 = vadd.f32 %v72, %v90
    %v95 = vadd.f32 %v73, %v91
    %v96 = vadd.f32 %v74, %v92
    %v97 = vadd.f32 %v75, %v93
    %98 = vset.pattern.permute.xlu0 2
    %99 = vperm.xlu0 %98, %v49
    %v100 = vpop.permute.xlu0 %99
    %101 = vset.pattern.permute.xlu0 2
    %102 = vperm.xlu0 %101, %v50
    %v103 = vpop.permute.xlu0 %102
    %vm104 = vcmp.eq.s32.totalorder %v52, %v100
    %vm105 = vcmp.eq.s32.totalorder %v53, %v100
    %vm106 = vcmp.eq.s32.totalorder %v52, %v103
    %vm107 = vcmp.eq.s32.totalorder %v53, %v103
    %v108 = vsel %vm104, 1, 0
    %v109 = vsel %vm105, 1, 0
    %v110 = vsel %vm106, 1, 0
    %v111 = vsel %vm107, 1, 0
    %v112 = vcvt.s32.f32 %v108
    %v113 = vcvt.s32.f32 %v109
    %v114 = vcvt.s32.f32 %v110
    %v115 = vcvt.s32.f32 %v111
    %v116 = vadd.f32 %v94, %v112
    %v117 = vadd.f32 %v95, %v113
    %v118 = vadd.f32 %v96, %v114
    %v119 = vadd.f32 %v97, %v115
    %120 = vset.pattern.permute.xlu0 3
    %121 = vperm.xlu0 %120, %v49
    %v122 = vpop.permute.xlu0 %121
    %123 = vset.pattern.permute.xlu0 3
    %124 = vperm.xlu0 %123, %v50
    %v125 = vpop.permute.xlu0 %124
    %vm126 = vcmp.eq.s32.totalorder %v52, %v122
    %vm127 = vcmp.eq.s32.totalorder %v53, %v122
    %vm128 = vcmp.eq.s32.totalorder %v52, %v125
    %vm129 = vcmp.eq.s32.totalorder %v53, %v125
    %v130 = vsel %vm126, 1, 0
    %v131 = vsel %vm127, 1, 0
    %v132 = vsel %vm128, 1, 0
    %v133 = vsel %vm129, 1, 0
    %v134 = vcvt.s32.f32 %v130
    %v135 = vcvt.s32.f32 %v131
    %v136 = vcvt.s32.f32 %v132
    %v137 = vcvt.s32.f32 %v133
    %v138 = vadd.f32 %v116, %v134
    %v139 = vadd.f32 %v117, %v135
    %v140 = vadd.f32 %v118, %v136
    %v141 = vadd.f32 %v119, %v137
    %142 = vset.pattern.permute.xlu0 4
    %143 = vperm.xlu0 %142, %v49
    %v144 = vpop.permute.xlu0 %143
    %145 = vset.pattern.permute.xlu0 4
    %146 = vperm.xlu0 %145, %v50
    %v147 = vpop.permute.xlu0 %146
    %vm148 = vcmp.eq.s32.totalorder %v52, %v144
    %vm149 = vcmp.eq.s32.totalorder %v53, %v144
    %vm150 = vcmp.eq.s32.totalorder %v52, %v147
    %vm151 = vcmp.eq.s32.totalorder %v53, %v147
    %v152 = vsel %vm148, 1, 0
    %v153 = vsel %vm149, 1, 0
    %v154 = vsel %vm150, 1, 0
    %v155 = vsel %vm151, 1, 0
    %v156 = vcvt.s32.f32 %v152
    %v157 = vcvt.s32.f32 %v153
    %v158 = vcvt.s32.f32 %v154
    %v159 = vcvt.s32.f32 %v155
    %v160 = vadd.f32 %v138, %v156
    %v161 = vadd.f32 %v139, %v157
    %v162 = vadd.f32 %v140, %v158
    %v163 = vadd.f32 %v141, %v159
    %164 = vset.pattern.permute.xlu0 5
    %165 = vperm.xlu0 %164, %v49
    %v166 = vpop.permute.xlu0 %165
    %167 = vset.pattern.permute.xlu0 5
    %168 = vperm.xlu0 %167, %v50
    %v169 = vpop.permute.xlu0 %168
    %vm170 = vcmp.eq.s32.totalorder %v52, %v166
    %vm171 = vcmp.eq.s32.totalorder %v53, %v166
    %vm172 = vcmp.eq.s32.totalorder %v52, %v169
    %vm173 = vcmp.eq.s32.totalorder %v53, %v169
    %v174 = vsel %vm170, 1, 0
    %v175 = vsel %vm171, 1, 0
    %v176 = vsel %vm172, 1, 0
    %v177 = vsel %vm173, 1, 0
    %v178 = vcvt.s32.f32 %v174
    %v179 = vcvt.s32.f32 %v175
    %v180 = vcvt.s32.f32 %v176
    %v181 = vcvt.s32.f32 %v177
    %v182 = vadd.f32 %v160, %v178
    %v183 = vadd.f32 %v161, %v179
    %v184 = vadd.f32 %v162, %v180
    %v185 = vadd.f32 %v163, %v181
    %186 = vset.pattern.permute.xlu0 6
    %187 = vperm.xlu0 %186, %v49
    %v188 = vpop.permute.xlu0 %187
    %189 = vset.pattern.permute.xlu0 6
    %190 = vperm.xlu0 %189, %v50
    %v191 = vpop.permute.xlu0 %190
    %vm192 = vcmp.eq.s32.totalorder %v52, %v188
    %vm193 = vcmp.eq.s32.totalorder %v53, %v188
    %vm194 = vcmp.eq.s32.totalorder %v52, %v191
    %vm195 = vcmp.eq.s32.totalorder %v53, %v191
    %v196 = vsel %vm192, 1, 0
    %v197 = vsel %vm193, 1, 0
    %v198 = vsel %vm194, 1, 0
    %v199 = vsel %vm195, 1, 0
    %v200 = vcvt.s32.f32 %v196
    %v201 = vcvt.s32.f32 %v197
    %v202 = vcvt.s32.f32 %v198
    %v203 = vcvt.s32.f32 %v199
    %v204 = vadd.f32 %v182, %v200
    %v205 = vadd.f32 %v183, %v201
    %v206 = vadd.f32 %v184, %v202
    %v207 = vadd.f32 %v185, %v203
    %208 = vset.pattern.permute.xlu0 7
    %209 = vperm.xlu0 %208, %v49
    %v210 = vpop.permute.xlu0 %209
    %211 = vset.pattern.permute.xlu0 7
    %212 = vperm.xlu0 %211, %v50
    %v213 = vpop.permute.xlu0 %212
    %vm214 = vcmp.eq.s32.totalorder %v52, %v210
    %vm215 = vcmp.eq.s32.totalorder %v53, %v210
    %vm216 = vcmp.eq.s32.totalorder %v52, %v213
    %vm217 = vcmp.eq.s32.totalorder %v53, %v213
    %v218 = vsel %vm214, 1, 0
    %v219 = vsel %vm215, 1, 0
    %v220 = vsel %vm216, 1, 0
    %v221 = vsel %vm217, 1, 0
    %v222 = vcvt.s32.f32 %v218
    %v223 = vcvt.s32.f32 %v219
    %v224 = vcvt.s32.f32 %v220
    %v225 = vcvt.s32.f32 %v221
    %v226 = vadd.f32 %v204, %v222
    %v227 = vadd.f32 %v205, %v223
    %v228 = vadd.f32 %v206, %v224
    %v229 = vadd.f32 %v207, %v225
    %v230 = vld [vmem:[#allocation2] sm:$0xff]
    %v231 = vld [vmem:[#allocation2 + $0x8] sm:$0xff]
    %v232 = vld [vmem:[#allocation2 + $0x10] sm:$0xff]
    %v233 = vld [vmem:[#allocation2 + $0x18] sm:$0xff]
    %v234 = vld [vmem:[#allocation2 + $0x20] sm:$0xff]
    %v235 = vld [vmem:[#allocation2 + $0x28] sm:$0xff]
    %v236 = vld [vmem:[#allocation2 + $0x30] sm:$0xff]
    %v237 = vld [vmem:[#allocation2 + $0x38] sm:$0xff]
    %v238 = vld [vmem:[#allocation2 + $0x40] sm:$0xff]
    %v239 = vld [vmem:[#allocation2 + $0x48] sm:$0xff]
    %v240 = vld [vmem:[#allocation2 + $0x50] sm:$0xff]
    %v241 = vld [vmem:[#allocation2 + $0x58] sm:$0xff]
    %v242 = vld [vmem:[#allocation2 + $0x60] sm:$0xff]
    %v243 = vld [vmem:[#allocation2 + $0x68] sm:$0xff]
    %v244 = vld [vmem:[#allocation2 + $0x70] sm:$0xff]
    %v245 = vld [vmem:[#allocation2 + $0x78] sm:$0xff]
    %v246 = vld [vmem:[#allocation2 + $0x80] sm:$0xff]
    %v247 = vld [vmem:[#allocation2 + $0x88] sm:$0xff]
    %v248 = vld [vmem:[#allocation2 + $0x90] sm:$0xff]
    %v249 = vld [vmem:[#allocation2 + $0x98] sm:$0xff]
    %v250 = vld [vmem:[#allocation2 + $0xa0] sm:$0xff]
    %v251 = vld [vmem:[#allocation2 + $0xa8] sm:$0xff]
    %v252 = vld [vmem:[#allocation2 + $0xb0] sm:$0xff]
    %v253 = vld [vmem:[#allocation2 + $0xb8] sm:$0xff]
    %v254 = vld [vmem:[#allocation2 + $0xc0] sm:$0xff]
    %v255 = vld [vmem:[#allocation2 + $0xc8] sm:$0xff]
    %v256 = vld [vmem:[#allocation2 + $0xd0] sm:$0xff]
    %v257 = vld [vmem:[#allocation2 + $0xd8] sm:$0xff]
    %v258 = vld [vmem:[#allocation2 + $0xe0] sm:$0xff]
    %v259 = vld [vmem:[#allocation2 + $0xe8] sm:$0xff]
    %v260 = vld [vmem:[#allocation2 + $0xf0] sm:$0xff]
    %v261 = vld [vmem:[#allocation2 + $0xf8] sm:$0xff]
    %v262 = vld [vmem:[%s2] sm:$0x1]
    %v264 = vlaneseq
    %v265 = vshrl.u32 %v264, 7
    %v266 = vsub.s32 0, %v265
    %v267 = vrot.slane %v262, %v266
    %269 = vmatprep.subr.mxu0 0.0
    %270 = vmatpush1.msra.mxu0 %v245
    %271 = vmatprep.subr.mxu0 0.0
    %272 = vmatpush1.msra.mxu0 %v244
    %273 = vmatprep.subr.mxu0 0.0
    %274 = vmatpush1.msra.mxu0 %v243
    %275 = vmatprep.subr.mxu0 0.0
    %276 = vmatpush1.msra.mxu0 %v242
    %277 = vmatprep.subr.mxu0 0.0
    %278 = vmatpush1.msra.mxu0 %v241
    %279 = vmatprep.subr.mxu0 0.0
    %280 = vmatpush1.msra.mxu0 %v240
    %281 = vmatprep.subr.mxu0 0.0
    %282 = vmatpush1.msra.mxu0 %v239
    %283 = vmatprep.subr.mxu0 0.0
    %284 = vmatpush1.msra.mxu0 %v238
    %285 = vmatprep.subr.mxu0 0.0
    %286 = vmatpush1.msra.mxu0 %v237
    %287 = vmatprep.subr.mxu0 0.0
    %288 = vmatpush1.msra.mxu0 %v236
    %289 = vmatprep.subr.mxu0 0.0
    %290 = vmatpush1.msra.mxu0 %v235
    %291 = vmatprep.subr.mxu0 0.0
    %292 = vmatpush1.msra.mxu0 %v234
    %293 = vmatprep.subr.mxu0 0.0
    %294 = vmatpush1.msra.mxu0 %v233
    %295 = vmatprep.subr.mxu0 0.0
    %296 = vmatpush1.msra.mxu0 %v232
    %297 = vmatprep.subr.mxu0 0.0
    %298 = vmatpush1.msra.mxu0 %v231
    %299 = vmatprep.subr.mxu0 0.0
    %300 = vmatpush1.msra.mxu0 %v230
    %301 = vmatprep.subr.mxu0 0.0
    %302 = vmatpush2.msra.mxu0 %v261
    %303 = vmatprep.subr.mxu0 0.0
    %304 = vmatpush2.msra.mxu0 %v260
    %305 = vmatprep.subr.mxu0 0.0
    %306 = vmatpush2.msra.mxu0 %v259
    %307 = vmatprep.subr.mxu0 0.0
    %308 = vmatpush2.msra.mxu0 %v258
    %309 = vmatprep.subr.mxu0 0.0
    %310 = vmatpush2.msra.mxu0 %v257
    %311 = vmatprep.subr.mxu0 0.0
    %312 = vmatpush2.msra.mxu0 %v256
    %313 = vmatprep.subr.mxu0 0.0
    %314 = vmatpush2.msra.mxu0 %v255
    %315 = vmatprep.subr.mxu0 0.0
    %316 = vmatpush2.msra.mxu0 %v254
    %317 = vmatprep.subr.mxu0 0.0
    %318 = vmatpush2.msra.mxu0 %v253
    %319 = vmatprep.subr.mxu0 0.0
    %320 = vmatpush2.msra.mxu0 %v252
    %321 = vmatprep.subr.mxu0 0.0
    %322 = vmatpush2.msra.mxu0 %v251
    %323 = vmatprep.subr.mxu0 0.0
    %324 = vmatpush2.msra.mxu0 %v250
    %325 = vmatprep.subr.mxu0 0.0
    %326 = vmatpush2.msra.mxu0 %v249
    %327 = vmatprep.subr.mxu0 0.0
    %328 = vmatpush2.msra.mxu0 %v248
    %329 = vmatprep.subr.mxu0 0.0
    %330 = vmatpush2.msra.mxu0 %v247
    %331 = vmatprep.subr.mxu0 0.0
    %332 = vmatpush2.msra.mxu0 %v246
    %333 = vmatprep.mubr.f32.mxu0 %v227
    %334 = vmatmul.mubr.f32.gmra.mxu0 %v226
    %v335 = vpop.f32.mrf.mxu0
    %v336 = vadd.f32 %v267, %v335
    %v337 = vpop.f32.mrf.mxu0
    %338 = vmatprep.mubr.f32.mxu0 %v229
    %339 = vmatmul.mubr.f32.gmra.mxu0 %v228
    %v340 = vpop.f32.mrf.mxu0
    %v341 = vadd.f32 %v267, %v340
    %v342 = vpop.f32.mrf.mxu0
    %343 = vdwg.mxu0
    %v344 = vmax.f32 %v336, 0.0
    %v345 = vmax.f32 %v341, 0.0
    %v346 = vld [vmem:[#allocation5] sm:$0xff]
    %v347 = vld [vmem:[#allocation5 + $0x8] sm:$0xff]
    %v348 = vld [vmem:[#allocation5 + $0x10] sm:$0xff]
    %v349 = vld [vmem:[#allocation5 + $0x18] sm:$0xff]
    %v350 = vld [vmem:[#allocation5 + $0x20] sm:$0xff]
    %v351 = vld [vmem:[#allocation5 + $0x28] sm:$0xff]
    %v352 = vld [vmem:[#allocation5 + $0x30] sm:$0xff]
    %v353 = vld [vmem:[#allocation5 + $0x38] sm:$0xff]
    %v354 = vld [vmem:[#allocation5 + $0x40] sm:$0xff]
    %v355 = vld [vmem:[#allocation5 + $0x48] sm:$0xff]
    %v356 = vld [vmem:[#allocation5 + $0x50] sm:$0xff]
    %v357 = vld [vmem:[#allocation5 + $0x58] sm:$0xff]
    %v358 = vld [vmem:[#allocation5 + $0x60] sm:$0xff]
    %v359 = vld [vmem:[#allocation5 + $0x68] sm:$0xff]
    %v360 = vld [vmem:[#allocation5 + $0x70] sm:$0xff]
    %v361 = vld [vmem:[#allocation5 + $0x78] sm:$0xff]
    %v362 = vld [vmem:[#allocation5 + $0x80] sm:$0xff]
    %v363 = vld [vmem:[#allocation5 + $0x88] sm:$0xff]
    %v364 = vld [vmem:[#allocation5 + $0x90] sm:$0xff]
    %v365 = vld [vmem:[#allocation5 + $0x98] sm:$0xff]
    %v366 = vld [vmem:[#allocation5 + $0xa0] sm:$0xff]
    %v367 = vld [vmem:[#allocation5 + $0xa8] sm:$0xff]
    %v368 = vld [vmem:[#allocation5 + $0xb0] sm:$0xff]
    %v369 = vld [vmem:[#allocation5 + $0xb8] sm:$0xff]
    %v370 = vld [vmem:[#allocation5 + $0xc0] sm:$0xff]
    %v371 = vld [vmem:[#allocation5 + $0xc8] sm:$0xff]
    %v372 = vld [vmem:[#allocation5 + $0xd0] sm:$0xff]
    %v373 = vld [vmem:[#allocation5 + $0xd8] sm:$0xff]
    %v374 = vld [vmem:[#allocation5 + $0xe0] sm:$0xff]
    %v375 = vld [vmem:[#allocation5 + $0xe8] sm:$0xff]
    %v376 = vld [vmem:[#allocation5 + $0xf0] sm:$0xff]
    %v377 = vld [vmem:[#allocation5 + $0xf8] sm:$0xff]
    %v378 = vld [vmem:[%s4] sm:$0x3]
    %v380 = vlaneseq
    %v381 = vshrl.u32 %v380, 7
    %v382 = vsub.s32 0, %v381
    %v383 = vrot.slane %v378, %v382
    %v384 = vlaneseq
    %v385 = vshrl.u32 %v384, 7
    %v386 = vsub.s32 1, %v385
    %v387 = vrot.slane %v378, %v386
    %390 = vmatprep.subr.mxu0 %v377
    %391 = vmatpush1.msra.mxu0 %v376
    %392 = vmatprep.subr.mxu0 %v375
    %393 = vmatpush1.msra.mxu0 %v374
    %394 = vmatprep.subr.mxu0 %v373
    %395 = vmatpush1.msra.mxu0 %v372
    %396 = vmatprep.subr.mxu0 %v371
    %397 = vmatpush1.msra.mxu0 %v370
    %398 = vmatprep.subr.mxu0 %v369
    %399 = vmatpush1.msra.mxu0 %v368
    %400 = vmatprep.subr.mxu0 %v367
    %401 = vmatpush1.msra.mxu0 %v366
    %402 = vmatprep.subr.mxu0 %v365
    %403 = vmatpush1.msra.mxu0 %v364
    %404 = vmatprep.subr.mxu0 %v363
    %405 = vmatpush1.msra.mxu0 %v362
    %406 = vmatprep.subr.mxu0 %v361
    %407 = vmatpush1.msra.mxu0 %v360
    %408 = vmatprep.subr.mxu0 %v359
    %409 = vmatpush1.msra.mxu0 %v358
    %410 = vmatprep.subr.mxu0 %v357
    %411 = vmatpush1.msra.mxu0 %v356
    %412 = vmatprep.subr.mxu0 %v355
    %413 = vmatpush1.msra.mxu0 %v354
    %414 = vmatprep.subr.mxu0 %v353
    %415 = vmatpush1.msra.mxu0 %v352
    %416 = vmatprep.subr.mxu0 %v351
    %417 = vmatpush1.msra.mxu0 %v350
    %418 = vmatprep.subr.mxu0 %v349
    %419 = vmatpush1.msra.mxu0 %v348
    %420 = vmatprep.subr.mxu0 %v347
    %421 = vmatpush1.msra.mxu0 %v346
    %422 = vmatprep.subr.mxu0 0.0
    %423 = vmatpush2.msra.mxu0 0.0
    %424 = vmatprep.subr.mxu0 0.0
    %425 = vmatpush2.msra.mxu0 0.0
    %426 = vmatprep.subr.mxu0 0.0
    %427 = vmatpush2.msra.mxu0 0.0
    %428 = vmatprep.subr.mxu0 0.0
    %429 = vmatpush2.msra.mxu0 0.0
    %430 = vmatprep.subr.mxu0 0.0
    %431 = vmatpush2.msra.mxu0 0.0
    %432 = vmatprep.subr.mxu0 0.0
    %433 = vmatpush2.msra.mxu0 0.0
    %434 = vmatprep.subr.mxu0 0.0
    %435 = vmatpush2.msra.mxu0 0.0
    %436 = vmatprep.subr.mxu0 0.0
    %437 = vmatpush2.msra.mxu0 0.0
    %438 = vmatprep.subr.mxu0 0.0
    %439 = vmatpush2.msra.mxu0 0.0
    %440 = vmatprep.subr.mxu0 0.0
    %441 = vmatpush2.msra.mxu0 0.0
    %442 = vmatprep.subr.mxu0 0.0
    %443 = vmatpush2.msra.mxu0 0.0
    %444 = vmatprep.subr.mxu0 0.0
    %445 = vmatpush2.msra.mxu0 0.0
    %446 = vmatprep.subr.mxu0 0.0
    %447 = vmatpush2.msra.mxu0 0.0
    %448 = vmatprep.subr.mxu0 0.0
    %449 = vmatpush2.msra.mxu0 0.0
    %450 = vmatprep.subr.mxu0 0.0
    %451 = vmatpush2.msra.mxu0 0.0
    %452 = vmatprep.subr.mxu0 0.0
    %453 = vmatpush2.msra.mxu0 0.0
    %454 = vmatprep.mubr.f32.mxu0 0.0
    %455 = vmatmul.mubr.f32.gmra.mxu0 %v344
    %v456 = vpop.f32.mrf.mxu0
    %v457 = vadd.f32 %v383, %v456
    %v458 = vpop.f32.mrf.mxu0
    %v459 = vadd.f32 %v387, %v458
    %460 = vmatprep.mubr.f32.mxu0 0.0
    %461 = vmatmul.mubr.f32.gmra.mxu0 %v345
    %v462 = vpop.f32.mrf.mxu0
    %v463 = vadd.f32 %v383, %v462
    %v464 = vpop.f32.mrf.mxu0
    %v465 = vadd.f32 %v387, %v464
    %466 = vdwg.mxu0
    %v467 = vmax.f32 %v457, %v459
    %468 = vmax.xlane.f32.xlu0 %v467
    %v469 = vpop.xlane.xlu0 %468
    %v470 = vmax.f32 %v463, %v465
    %471 = vmax.xlane.f32.xlu0 %v470
    %v472 = vpop.xlane.xlu0 %471
    %v473 = vsub.f32 %v457, %v469
    %v474 = vsub.f32 %v459, %v469
    %v475 = vsub.f32 %v463, %v472
    %v476 = vsub.f32 %v465, %v472
    %v477 = vmul.f32 %v473, 1.442695
    %v478 = vpow.pop %v477
    %v479 = vmul.f32 %v474, 1.442695
    %v480 = vpow.pop %v479
    %v481 = vmul.f32 %v475, 1.442695
    %v482 = vpow.pop %v481
    %v483 = vmul.f32 %v476, 1.442695
    %v484 = vpow.pop %v483
    %v485 = vadd.f32 %v478, %v480
    %486 = vadd.xlane.f32.xlu0 %v485
    %v487 = vpop.xlane.xlu0 %486
    %v488 = vadd.f32 %v482, %v484
    %489 = vadd.xlane.f32.xlu0 %v488
    %v490 = vpop.xlane.xlu0 %489
    %v491 = vlog2.pop %v487
    %v492 = vmul.f32 %v491, 0.6931472
    %v493 = vlog2.pop %v490
    %v494 = vmul.f32 %v493, 0.6931472
    %v495 = vsub.f32 %v473, %v492
    %v496 = vsub.f32 %v474, %v492
    %v497 = vsub.f32 %v475, %v494
    %v498 = vsub.f32 %v476, %v494
    %499 = vst [vmem:[#allocation7] sm:$0xff] %v495
    %500 = vst [vmem:[#allocation7 + $0x8] sm:$0xff] %v496
    %501 = vst [vmem:[#allocation7 + $0x10] sm:$0xff] %v497
    %502 = vst [vmem:[#allocation7 + $0x18] sm:$0xff] %v498
    // Predicated region
    $region30: #{tpu_custom_call.1} parent=1 // pred_check
      _
    $region31: #{tpu_custom_call.1} parent=1 // pred_check_branch
      %504 = sbr.rel (0) target = $region33
    $region32: #{tpu_custom_call.1} parent=1 // pred_region
      %s506 = ssub.s32 512, 512
      %507 = vsyncadd [#allocation4], %s506
      %s508 = sshll.u32 [#allocation7], 4
      %s509 = int_to_ptr.vmem [resolvable:$true] %s508
      %514 = dma.vmem_to_hbm [thread:$0]  %s509, 512, %s5, [#allocation4], 256, 256, 16
    $region33: #{tpu_custom_call.1} parent=1 // pred_fallthru
      _
    // Predicated region
    $region34: #{tpu_custom_call.1} parent=1 // pred_check
      _
    $region35: #{tpu_custom_call.1} parent=1 // pred_check_branch
      %516 = sbr.rel (0) target = $region37
    $region36: #{tpu_custom_call.1} parent=1 // pred_region
      %517 = dma.done [#allocation4], 512
    $region37: #{tpu_custom_call.1} parent=1 // pred_fallthru
      _
    %518 = vsyncpa [#allocation3], 1
    %519 = vsyncpa [#allocation6], 1
    %520 = vsyncpa [#allocation4], 1

</llo_original>
